<compile_context>
chip_gen: v7x
topology: tpu7x:2x2x1
jax: 0.10.0
libtpu: 0.0.40
codegen_flags: <defaults>
</compile_context>

<pallas_src>
from collections import OrderedDict
from functools import partial

import jax
import jax.numpy as jnp
from jax.experimental import pallas as pl
from jax.experimental.pallas import tpu as pltpu


# ----------------------------------------------------------------------------
# Physical VMEM cap (queried once; conservative fallback = v7x-safe 48 MiB).
# ----------------------------------------------------------------------------
def _query_vmem_cap_bytes():
    try:
        return int(pltpu.get_tpu_info().vmem_capacity_bytes) * 3 // 4
    except Exception:
        return 48 * 1024 * 1024


_VMEM_CAP_BYTES = _query_vmem_cap_bytes()


# ----------------------------------------------------------------------------
# Pallas kernel: tiled  y = x @ W + b ; outputs (y, relu(y))
# grid = (M//tm, N//tn, K//tk), reduction (K) axis last; f32 accumulator.
# ----------------------------------------------------------------------------
def _dense_relu_kernel(x_ref, w_ref, b_ref, logits_ref, feat_ref, acc_ref):
    k = pl.program_id(2)

    @pl.when(k == 0)
    def _():
        acc_ref[...] = jnp.zeros_like(acc_ref)

    # bf16 x bf16 -> f32 accumulate on the MXU.
    acc_ref[...] += jnp.dot(
        x_ref[...], w_ref[...], preferred_element_type=jnp.float32
    )

    @pl.when(k == pl.num_programs(2) - 1)
    def _():
        y = acc_ref[...] + b_ref[...]          # f32 epilogue (b is (1, tn))
        logits_ref[...] = y.astype(logits_ref.dtype)
        feat_ref[...] = jnp.maximum(y, 0.0).astype(feat_ref.dtype)


def _pick_tile(dim, candidates):
    for c in candidates:
        if dim % c == 0:
            return c
    return dim


@partial(jax.jit, static_argnames=("compute_dtype", "out_dtype"))
def dense_relu_pallas(x, w, b, *, compute_dtype=jnp.bfloat16,
                      out_dtype=jnp.bfloat16):
    """x: (B, K), w: (K, N), b: (1, N) -> (logits, features) in out_dtype."""
    B, K = x.shape
    Kw, N = w.shape
    assert Kw == K and b.shape == (1, N)
    assert K % 128 == 0 and N % 128 == 0, "hidden dims must be multiples of 128"

    # Batch padding / M tile choice:
    #  * small batches pad to a multiple of 16 (bf16 packs 16 rows per vreg)
    #    and use a single M block;
    #  * large batches tile M by 256 (fills 2x256^2 MXU rows on v6e/v7x) or
    #    128 when 128 < B < 256.
    if B > 128:
        tm = 256 if B >= 256 else 128
        Mp = pl.cdiv(B, tm) * tm
    else:
        Mp = ((B + 15) // 16) * 16
        tm = Mp

    # Lane-dense output tiles / deep K tiles so the per-step W DMA volume is
    # well above the ~0.35 us per-step pipeline overhead.
    tn = _pick_tile(N, (512, 256, 128))
    tk = _pick_tile(K, (2048, 1024, 512, 256, 128))

    x_c = x if x.dtype == compute_dtype else x.astype(compute_dtype)
    w_c = w if w.dtype == compute_dtype else w.astype(compute_dtype)  # pre-cast upstream
    b_c = b if b.dtype == jnp.float32 else b.astype(jnp.float32)
    if Mp != B:
        x_c = jnp.pad(x_c, ((0, Mp - B), (0, 0)))

    grid = (Mp // tm, N // tn, K // tk)
    k_steps = K // tk

    # Deeper buffering on the dominant (W) DMA stream when the K loop is long.
    w_buffers = 3 if k_steps >= 4 else 2
    w_spec_kwargs = {}
    if w_buffers == 3:
        w_spec_kwargs["pipeline_mode"] = pl.Buffered(3)
    w_spec = pl.BlockSpec((tk, tn), lambda i, j, k: (k, j), **w_spec_kwargs)

    in_itemsize = jnp.dtype(compute_dtype).itemsize
    out_itemsize = jnp.dtype(out_dtype).itemsize

    # Double-buffered VMEM footprint; set the limit from it (headroom x2),
    # capped at ~3/4 of physical VMEM (v7x has only 64 MiB).
    footprint = (
        2 * tm * tk * in_itemsize               # x (double-buffered)
        + w_buffers * tk * tn * in_itemsize     # W (2- or 3-deep)
        + 2 * 8 * tn * 4                        # bias tile (sublane-padded)
        + 2 * 2 * tm * tn * out_itemsize        # two outputs, double-buffered
        + tm * tn * 4                           # f32 accumulator scratch
    )
    vmem_limit = int(min(_VMEM_CAP_BYTES, max(32 * 1024 * 1024, 2 * footprint)))

    cost = pl.CostEstimate(
        flops=2 * Mp * K * N,
        transcendentals=0,
        bytes_accessed=(Mp * K * in_itemsize        # x
                        + K * N * in_itemsize       # W
                        + N * 4                     # b
                        + 2 * Mp * N * out_itemsize),  # two outputs
    )

    # TODO(synk): for very large B (B*K ~ K*N) x is re-streamed N/tn times with
    # this (i, j, k) ordering; a per-i VMEM-resident x row-panel would remove it.
    logits, feat = pl.pallas_call(
        _dense_relu_kernel,
        out_shape=(
            jax.ShapeDtypeStruct((Mp, N), out_dtype),
            jax.ShapeDtypeStruct((Mp, N), out_dtype),
        ),
        grid_spec=pltpu.PrefetchScalarGridSpec(
            num_scalar_prefetch=0,
            grid=grid,
            in_specs=[
                pl.BlockSpec((tm, tk), lambda i, j, k: (i, k)),   # x tile
                w_spec,                                           # W tile
                pl.BlockSpec((1, tn), lambda i, j, k: (0, j)),    # bias tile
            ],
            out_specs=[
                pl.BlockSpec((tm, tn), lambda i, j, k: (i, j)),
                pl.BlockSpec((tm, tn), lambda i, j, k: (i, j)),
            ],
            scratch_shapes=[pltpu.VMEM((tm, tn), jnp.float32)],
        ),
        compiler_params=pltpu.CompilerParams(
            dimension_semantics=("parallel", "parallel", "arbitrary"),
            vmem_limit_bytes=vmem_limit,
        ),
        cost_estimate=cost,
    )(x_c, w_c, b_c)

    return logits[:B], feat[:B]


# ----------------------------------------------------------------------------
# BaseNet semantics (JAX side).  Mirrors the PyTorch control flow:
#   __call__ -> loops over the number of named outputs calling forward();
#   forward() computes dict_forward ONCE (self.once == 1), caches it, and
#   __call__ returns self.stored (the full output dict).
# Output-name discovery happens once at __init__ via jax.eval_shape (abstract
# tracing only), so __call__ launches exactly one kernel.
# ----------------------------------------------------------------------------
class BaseNetPallas:
    def __init__(self, params, trainable=True, restore=True):
        self.trainable = trainable
        self.restore = restore
        self.params = dict(params)

        hidden = self.params["hidden"]
        # Deterministic parameter init (synthetic, no checkpoint load).
        kw, kb = jax.random.split(jax.random.PRNGKey(42))
        self.weight = (
            jax.random.normal(kw, (hidden, hidden), dtype=jnp.float32)
            / jnp.sqrt(jnp.float32(hidden))
        )
        self.bias = jax.random.normal(kb, (1, hidden), dtype=jnp.float32) * 0.1
        # Pre-cast W to the MXU compute dtype ONCE (not per call).
        # TODO(synk): in a training loop this cached copy must be refreshed
        # after each optimizer update of self.weight.
        self.weight_bf16 = self.weight.astype(jnp.bfloat16)

        # Cache output names once, via abstract tracing only (no kernel run).
        in_spec = jax.ShapeDtypeStruct(
            (self.params["batch_size"], hidden), jnp.float32
        )
        out_tree = jax.eval_shape(self.dict_forward, in_spec)
        self._output_names = tuple(out_tree.keys())

    # --- trainable / restorable bookkeeping ----------------------------------
    def get_trainable(self):
        if self.trainable:
            return [("dense.weight", self.weight), ("dense.bias", self.bias)]
        return []

    def get_restorable(self):
        if self.restore:
            return [("dense.weight", self.weight), ("dense.bias", self.bias)]
        return []

    # --- concrete dict_forward (abstract in the reference) -------------------
    def dict_forward(self, inputs):
        logits, features = dense_relu_pallas(
            inputs, self.weight_bf16, self.bias
        )
        return OrderedDict([("logits", logits), ("features", features)])

    def get_inputs(self):
        return jnp.zeros(
            (self.params["batch_size"], self.params["hidden"]), jnp.float32
        )

    def get_outputs(self):
        # Kept for API fidelity with the reference; __call__ uses the cached
        # name list instead of re-running this.
        return self.dict_forward(self.get_inputs())

    # --- __call__ / forward caching semantics ---------------------------------
    def forward(self, inputs):
        self.once += 1
        if self.once == 1:
            self.stored = self.dict_forward(inputs)
        return list(self.stored.values())[self.once - 1]

    def __call__(self, x):
        self.once = 0
        for _ in range(len(self._output_names)):   # cached names: 1 kernel launch
            self.forward(x)
        return self.stored


# ----------------------------------------------------------------------------
if __name__ == "__main__":
    params = {"batch_size": 8, "hidden": 128, "deprecate": None}
    net = BaseNetPallas(params)

    x = jax.random.normal(
        jax.random.PRNGKey(0),
        (params["batch_size"], params["hidden"]),
        dtype=jnp.float32,
    )

    out = net(x)                         # dict: {"logits": ..., "features": ...}
    for v in out.values():
        jax.block_until_ready(v)

    # Cross-check against a plain-JAX reference of the same synthetic body,
    # using the same bf16-rounded operands the kernel feeds the MXU and
    # bf16-rounded outputs (the kernel emits bf16 by default).
    xr = x.astype(jnp.bfloat16).astype(jnp.float32)
    wr = net.weight_bf16.astype(jnp.float32)
    ref_logits = (xr @ wr + net.bias).astype(jnp.bfloat16).astype(jnp.float32)
    ref_feat = jnp.maximum(ref_logits, 0.0)

    out_logits = out["logits"].astype(jnp.float32)
    out_feat = out["features"].astype(jnp.float32)

    assert out["logits"].shape == (params["batch_size"], params["hidden"])
    assert out["features"].shape == (params["batch_size"], params["hidden"])
    assert jnp.allclose(out_logits, ref_logits, atol=5e-2, rtol=5e-2)
    assert jnp.allclose(out_feat, ref_feat, atol=5e-2, rtol=5e-2)

    print("KERNEL_OK")
</pallas_src>

<mosaic_0001>
module attributes {stable_mosaic.version = 11 : i64} {
  func.func @_dense_relu_kernel(%arg0: i32, %arg1: i32, %arg2: i32, %arg3: memref<16x128xbf16, #tpu.memory_space<vmem>>, %arg4: memref<128x128xbf16, #tpu.memory_space<vmem>>, %arg5: memref<1x128xf32, #tpu.memory_space<vmem>>, %arg6: memref<16x128xbf16, #tpu.memory_space<vmem>>, %arg7: memref<16x128xbf16, #tpu.memory_space<vmem>>, %arg8: memref<16x128xf32, #tpu.memory_space<vmem>>) attributes {dimension_semantics = [#tpu.dimension_semantics<parallel>, #tpu.dimension_semantics<parallel>, #tpu.dimension_semantics<arbitrary>], iteration_bounds = array<i64: 1, 1, 1>, scalar_prefetch = 0 : i64, scratch_operands = 1 : i64, tpu.core_type = #tpu.core_type<tc>, window_params = [{transform_indices = @transform_0, window_bounds = array<i64: 16, 128>}, {transform_indices = @transform_1, window_bounds = array<i64: 128, 128>}, {transform_indices = @transform_2, window_bounds = array<i64: 1, 128>}, {transform_indices = @transform_3, window_bounds = array<i64: 16, 128>}, {transform_indices = @transform_4, window_bounds = array<i64: 16, 128>}]} {
    %c0_i32 = arith.constant 0 : i32
    %0 = arith.cmpi eq, %arg2, %c0_i32 : i32
    %1 = arith.extui %0 : i1 to i32
    %c0_i32_0 = arith.constant 0 : i32
    %2 = arith.cmpi ne, %1, %c0_i32_0 : i32
    scf.if %2 {
      %cst_10 = arith.constant 0.000000e+00 : f32
      %12 = vector.broadcast %cst_10 : f32 to vector<16x128xf32>
      %c0_11 = arith.constant 0 : index
      %c0_12 = arith.constant 0 : index
      %13 = vector.load %arg8[%c0_11, %c0_12] : memref<16x128xf32, #tpu.memory_space<vmem>>, vector<16x128xf32>
      tpu.vector_store %arg8[%c0_11, %c0_12], %12 {strides = array<i32>} : memref<16x128xf32, #tpu.memory_space<vmem>>, vector<16x128xf32>,
    } else {
    }
    %c0 = arith.constant 0 : index
    %c0_1 = arith.constant 0 : index
    %3 = vector.load %arg8[%c0, %c0_1] : memref<16x128xf32, #tpu.memory_space<vmem>>, vector<16x128xf32>
    %c0_2 = arith.constant 0 : index
    %c0_3 = arith.constant 0 : index
    %4 = vector.load %arg3[%c0_2, %c0_3] : memref<16x128xbf16, #tpu.memory_space<vmem>>, vector<16x128xbf16>
    %c0_4 = arith.constant 0 : index
    %c0_5 = arith.constant 0 : index
    %5 = vector.load %arg4[%c0_4, %c0_5] : memref<128x128xbf16, #tpu.memory_space<vmem>>, vector<128x128xbf16>
    %cst = arith.constant dense<0.000000e+00> : vector<16x128xf32>
    %6 = tpu.matmul %4, %5, %cst {dimension_numbers = #tpu.dot_dimension_numbers<[1], [0], [0], [1], [0, 0, 1, 1], [], []>} : vector<16x128xbf16>, vector<128x128xbf16>, vector<16x128xf32> -> vector<16x128xf32>
    %7 = arith.addf %3, %6 : vector<16x128xf32>
    %c0_6 = arith.constant 0 : index
    %c0_7 = arith.constant 0 : index
    %8 = vector.load %arg8[%c0_6, %c0_7] : memref<16x128xf32, #tpu.memory_space<vmem>>, vector<16x128xf32>
    tpu.vector_store %arg8[%c0_6, %c0_7], %7 {strides = array<i32>} : memref<16x128xf32, #tpu.memory_space<vmem>>, vector<16x128xf32>,
    %c0_i32_8 = arith.constant 0 : i32
    %9 = arith.cmpi eq, %arg2, %c0_i32_8 : i32
    %10 = arith.extui %9 : i1 to i32
    %c0_i32_9 = arith.constant 0 : i32
    %11 = arith.cmpi ne, %10, %c0_i32_9 : i32
    scf.if %11 {
      %c0_10 = arith.constant 0 : index
      %c0_11 = arith.constant 0 : index
      %12 = vector.load %arg8[%c0_10, %c0_11] : memref<16x128xf32, #tpu.memory_space<vmem>>, vector<16x128xf32>
      %c0_12 = arith.constant 0 : index
      %c0_13 = arith.constant 0 : index
      %13 = vector.load %arg5[%c0_12, %c0_13] : memref<1x128xf32, #tpu.memory_space<vmem>>, vector<1x128xf32>
      %14 = vector.broadcast %13 : vector<1x128xf32> to vector<16x128xf32>
      %15 = arith.addf %12, %14 : vector<16x128xf32>
      %16 = arith.truncf %15 : vector<16x128xf32> to vector<16x128xbf16>
      %c0_14 = arith.constant 0 : index
      %c0_15 = arith.constant 0 : index
      %17 = vector.load %arg6[%c0_14, %c0_15] : memref<16x128xbf16, #tpu.memory_space<vmem>>, vector<16x128xbf16>
      tpu.vector_store %arg6[%c0_14, %c0_15], %16 {strides = array<i32>} : memref<16x128xbf16, #tpu.memory_space<vmem>>, vector<16x128xbf16>,
      %cst_16 = arith.constant 0.000000e+00 : f32
      %18 = vector.broadcast %cst_16 : f32 to vector<16x128xf32>
      %19 = arith.maximumf %15, %18 : vector<16x128xf32>
      %20 = arith.truncf %19 : vector<16x128xf32> to vector<16x128xbf16>
      %c0_17 = arith.constant 0 : index
      %c0_18 = arith.constant 0 : index
      %21 = vector.load %arg7[%c0_17, %c0_18] : memref<16x128xbf16, #tpu.memory_space<vmem>>, vector<16x128xbf16>
      tpu.vector_store %arg7[%c0_17, %c0_18], %20 {strides = array<i32>} : memref<16x128xbf16, #tpu.memory_space<vmem>>, vector<16x128xbf16>,
    } else {
    }
    return
  }
  func.func @transform_0(%arg0: i32, %arg1: i32, %arg2: i32) -> (i32, i32) {
    %c0_i32 = arith.constant 0 : i32
    return %arg0, %arg2 : i32, i32
  }
  func.func @transform_1(%arg0: i32, %arg1: i32, %arg2: i32) -> (i32, i32) {
    %c0_i32 = arith.constant 0 : i32
    return %arg2, %arg1 : i32, i32
  }
  func.func @transform_2(%arg0: i32, %arg1: i32, %arg2: i32) -> (i32, i32) {
    %c0_i32 = arith.constant 0 : i32
    %c0_i32_0 = arith.constant 0 : i32
    return %c0_i32, %arg1 : i32, i32
  }
  func.func @transform_3(%arg0: i32, %arg1: i32, %arg2: i32) -> (i32, i32) {
    %c0_i32 = arith.constant 0 : i32
    return %arg0, %arg1 : i32, i32
  }
  func.func @transform_4(%arg0: i32, %arg1: i32, %arg2: i32) -> (i32, i32) {
    %c0_i32 = arith.constant 0 : i32
    return %arg0, %arg1 : i32, i32
  }
}

</mosaic_0001>

<llo_original>
// kernel: dense_relu_pallas.1
$region0: #{dense_relu_pallas.1}
  #allocation0 [shape = 'u32[]', space=smem, size = 0x4, offset = 0x4, fixed_abs, tag = 'smem constant byte address 0x4 - core index']
  #allocation1 [shape = 'u32[144,128]{1,0:T(1,128)}', space=vmem, size = 0x12000, scoped, tag = 'internal scratch']
  #allocation2 [shape = 'f32[16,128]{1,0:T(8,128)}', space=vmem, size = 0x2000, scoped, tag = 'scratch operand']
  %s0 = inlined_call_operand.vmem [shape: bf16[16,128], index: 0, kind: input, shape index: {}]
  %s1 = inlined_call_operand.hbm [shape: bf16[128,128], index: 1, kind: input, shape index: {}]
  %s2 = inlined_call_operand.vmem [shape: f32[1,128], index: 2, kind: input, shape index: {}]
  %s3 = inlined_call_operand.vmem [shape: bf16[16,128], index: 3, kind: output, shape index: {0}]
  %s4 = inlined_call_operand.vmem [shape: bf16[16,128], index: 4, kind: output, shape index: {1}]
  %5 = xla_tuple %s3, %s4
  %s6 = sld [smem:[#allocation0]]
  $region42: #{dense_relu_pallas.1} parent=0
    _
  %s8 = ssub.s32 1, %s6
  %s9 = scalar_select 0, %s8, %s6
  $region1: #{dense_relu_pallas.1} parent=0
    #allocation3 [shape = 'u8[32768]{0}', space=vmem, size = 0x8000, scoped, tag = 'input window, operand 1, single buffered']
    #allocation4 [shape = 's32[1]{0}', space=sflag, size = 0x4, scoped, tag = 'scoped memory for dense_relu_pallas.1']
    %10 = vsyncpa [#allocation4], 0
    // Predicated region
    $region2: #{dense_relu_pallas.1} parent=1 // pred_check
      _
    $region3: #{dense_relu_pallas.1} parent=1 // pred_check_branch
      %12 = sbr.rel (0) target = $region5
    $region4: #{dense_relu_pallas.1} parent=1 // pred_region
      _
    $region5: #{dense_relu_pallas.1} parent=1 // pred_fallthru
      _
    // Predicated region
    $region6: #{dense_relu_pallas.1} parent=1 // pred_check
      _
    $region7: #{dense_relu_pallas.1} parent=1 // pred_check_branch
      %14 = sbr.rel (0) target = $region9
    $region8: #{dense_relu_pallas.1} parent=1 // pred_region
      %s16 = ssub.s32 1024, 1024
      %17 = vsyncadd [#allocation4], %s16
      %s18 = sshll.u32 [#allocation3], 4
      %s19 = int_to_ptr.vmem [resolvable:$true] %s18
      %24 = dma.hbm_to_vmem [thread:$0]  %s1, 1024, %s19, [#allocation4], 64, 64, 4
    $region9: #{dense_relu_pallas.1} parent=1 // pred_fallthru
      _
    // Predicated region
    $region10: #{dense_relu_pallas.1} parent=1 // pred_check
      _
    $region11: #{dense_relu_pallas.1} parent=1 // pred_check_branch
      %26 = sbr.rel (0) target = $region13
    $region12: #{dense_relu_pallas.1} parent=1 // pred_region
      _
    $region13: #{dense_relu_pallas.1} parent=1 // pred_fallthru
      _
    // Predicated region
    $region14: #{dense_relu_pallas.1} parent=1 // pred_check
      _
    $region15: #{dense_relu_pallas.1} parent=1 // pred_check_branch
      %28 = sbr.rel (0) target = $region17
    $region16: #{dense_relu_pallas.1} parent=1 // pred_region
      %29 = dma.done [#allocation4], 1024
    $region17: #{dense_relu_pallas.1} parent=1 // pred_fallthru
      _
    %p31 = scmp.eq.s32.totalorder 0, 0
    // Predicated region
    $region18: #{dense_relu_pallas.1} parent=1 // pred_check
      %p32 = pneg %p31
    $region19: #{dense_relu_pallas.1} parent=1 // pred_check_branch
      %34 = sbr.rel (%p32) target = $region21
    $region20: #{dense_relu_pallas.1} parent=1 // pred_region
      %35 = vst [vmem:[#allocation2] sm:$0xff] 0.0
      %36 = vst [vmem:[#allocation2 + $0x8] sm:$0xff] 0.0
    $region21: #{dense_relu_pallas.1} parent=1 // pred_fallthru
      _
    %v37 = vld [vmem:[#allocation2] sm:$0xff]
    %v38 = vld [vmem:[#allocation2 + $0x8] sm:$0xff]
    %v39 = vld [vmem:[%s0] sm:$0xf]
    %v40 = vld [vmem:[%s0 + $0x4] sm:$0xf]
    %v41 = vld [vmem:[#allocation3] sm:$0xf]
    %v42 = vld [vmem:[#allocation3 + $0x4] sm:$0xf]
    %v43 = vld [vmem:[#allocation3 + $0x8] sm:$0xf]
    %v44 = vld [vmem:[#allocation3 + $0xc] sm:$0xf]
    %v45 = vld [vmem:[#allocation3 + $0x10] sm:$0xf]
    %v46 = vld [vmem:[#allocation3 + $0x14] sm:$0xf]
    %v47 = vld [vmem:[#allocation3 + $0x18] sm:$0xf]
    %v48 = vld [vmem:[#allocation3 + $0x1c] sm:$0xf]
    %v49 = vld [vmem:[#allocation3 + $0x20] sm:$0xf]
    %v50 = vld [vmem:[#allocation3 + $0x24] sm:$0xf]
    %v51 = vld [vmem:[#allocation3 + $0x28] sm:$0xf]
    %v52 = vld [vmem:[#allocation3 + $0x2c] sm:$0xf]
    %v53 = vld [vmem:[#allocation3 + $0x30] sm:$0xf]
    %v54 = vld [vmem:[#allocation3 + $0x34] sm:$0xf]
    %v55 = vld [vmem:[#allocation3 + $0x38] sm:$0xf]
    %v56 = vld [vmem:[#allocation3 + $0x3c] sm:$0xf]
    %v59 = vunpack.c.l.b16 %v39
    %v60 = vunpack.c.l.b16 %v40
    %v61 = vpack.c.b16 %v60, %v59
    %v79 = vunpack.c.l.b16 %v41
    %v80 = vunpack.c.l.b16 %v42
    %v81 = vunpack.c.l.b16 %v43
    %v82 = vunpack.c.l.b16 %v44
    %v83 = vunpack.c.l.b16 %v45
    %v84 = vunpack.c.l.b16 %v46
    %v85 = vunpack.c.l.b16 %v47
    %v86 = vunpack.c.l.b16 %v48
    %v87 = vunpack.c.l.b16 %v49
    %v88 = vunpack.c.l.b16 %v50
    %v89 = vunpack.c.l.b16 %v51
    %v90 = vunpack.c.l.b16 %v52
    %v91 = vunpack.c.l.b16 %v53
    %v92 = vunpack.c.l.b16 %v54
    %v93 = vunpack.c.l.b16 %v55
    %v94 = vunpack.c.l.b16 %v56
    %v95 = vpack.c.b16 %v80, %v79
    %v96 = vpack.c.b16 %v82, %v81
    %v97 = vpack.c.b16 %v84, %v83
    %v98 = vpack.c.b16 %v86, %v85
    %v99 = vpack.c.b16 %v88, %v87
    %v100 = vpack.c.b16 %v90, %v89
    %v101 = vpack.c.b16 %v92, %v91
    %v102 = vpack.c.b16 %v94, %v93
    %111 = vmatprep.subr.bf16.mxu0 0
    %112 = vmatpush1.bf16.msra.mxu0 %v95
    %113 = vmatprep.subr.bf16.mxu0 0
    %114 = vmatpush1.bf16.msra.mxu0 %v96
    %115 = vmatprep.subr.bf16.mxu0 0
    %116 = vmatpush1.bf16.msra.mxu0 %v97
    %117 = vmatprep.subr.bf16.mxu0 0
    %118 = vmatpush1.bf16.msra.mxu0 %v98
    %119 = vmatprep.subr.bf16.mxu0 0
    %120 = vmatpush1.bf16.msra.mxu0 %v99
    %121 = vmatprep.subr.bf16.mxu0 0
    %122 = vmatpush1.bf16.msra.mxu0 %v100
    %123 = vmatprep.subr.bf16.mxu0 0
    %124 = vmatpush1.bf16.msra.mxu0 %v101
    %125 = vmatprep.subr.bf16.mxu0 0
    %126 = vmatpush1.bf16.msra.mxu0 %v102
    %127 = vmatprep.subr.bf16.mxu0 0
    %128 = vmatpush1.bf16.msra.mxu0 0
    %129 = vmatprep.subr.bf16.mxu0 0
    %130 = vmatpush1.bf16.msra.mxu0 0
    %131 = vmatprep.subr.bf16.mxu0 0
    %132 = vmatpush1.bf16.msra.mxu0 0
    %133 = vmatprep.subr.bf16.mxu0 0
    %134 = vmatpush1.bf16.msra.mxu0 0
    %135 = vmatprep.subr.bf16.mxu0 0
    %136 = vmatpush1.bf16.msra.mxu0 0
    %137 = vmatprep.subr.bf16.mxu0 0
    %138 = vmatpush1.bf16.msra.mxu0 0
    %139 = vmatprep.subr.bf16.mxu0 0
    %140 = vmatpush1.bf16.msra.mxu0 0
    %141 = vmatprep.subr.bf16.mxu0 0
    %142 = vmatpush1.bf16.msra.mxu0 0
    %143 = vmatprep.mubr.bf16.mxu0 0
    %144 = vmatmul.mubr.bf16.gmra.mrb[0].mxu0 %v61
    %v145 = vpop.f32.mrb[0].mxu0
    %v146 = vadd.f32 0.0, %v145
    %v147 = vpop.f32.mrb[0].mxu0
    %v148 = vpop.f32.mrb[0].mxu0
    %v149 = vadd.f32 0.0, %v148
    %v150 = vpop.f32.mrb[0].mxu0
    %151 = vdwg.mxu0
    %v152 = vadd.f32 %v37, %v146
    %v153 = vadd.f32 %v38, %v149
    %154 = vst [vmem:[#allocation2] sm:$0xff] %v152
    %155 = vst [vmem:[#allocation2 + $0x8] sm:$0xff] %v153
    // Predicated region
    $region22: #{dense_relu_pallas.1} parent=1 // pred_check
      %p156 = pneg %p31
    $region23: #{dense_relu_pallas.1} parent=1 // pred_check_branch
      %158 = sbr.rel (%p156) target = $region25
    $region24: #{dense_relu_pallas.1} parent=1 // pred_region
      %v159 = vld [vmem:[#allocation2] sm:$0xff]
      %v160 = vld [vmem:[#allocation2 + $0x8] sm:$0xff]
      %v161 = vld [vmem:[%s2] sm:$0x1]
      %v163 = vlaneseq
      %v164 = vshrl.u32 %v163, 7
      %v165 = vsub.s32 0, %v164
      %v166 = vrot.slane %v161, %v165
      %v168 = vadd.f32 %v159, %v166
      %v169 = vadd.f32 %v160, %v166
      %v170 = vpack.c.bf16 %v169, %v168
      %v172 = vunpack.c.l.b16 %v170
      %v173 = vunpack.c.h.b16 %v170
      %v174 = vpack.c.b16 %v172, %v172
      %v175 = vpack.c.b16 %v173, %v173
      %178 = vst [vmem:[%s3] sm:$0xf] %v174
      %179 = vst [vmem:[%s3 + $0x4] sm:$0xf] %v175
      %v180 = vmax.f32 %v168, 0.0
      %v181 = vmax.f32 %v169, 0.0
      %v182 = vpack.c.bf16 %v181, %v180
      %v184 = vunpack.c.l.b16 %v182
      %v185 = vunpack.c.h.b16 %v182
      %v186 = vpack.c.b16 %v184, %v184
      %v187 = vpack.c.b16 %v185, %v185
      %190 = vst [vmem:[%s4] sm:$0xf] %v186
      %191 = vst [vmem:[%s4 + $0x4] sm:$0xf] %v187
    $region25: #{dense_relu_pallas.1} parent=1 // pred_fallthru
      _
    // Predicated region
    $region26: #{dense_relu_pallas.1} parent=1 // pred_check
      _
    $region27: #{dense_relu_pallas.1} parent=1 // pred_check_branch
      %193 = sbr.rel (0) target = $region29
    $region28: #{dense_relu_pallas.1} parent=1 // pred_region
      _
    $region29: #{dense_relu_pallas.1} parent=1 // pred_fallthru
      _
    // Predicated region
    $region30: #{dense_relu_pallas.1} parent=1 // pred_check
      _
    $region31: #{dense_relu_pallas.1} parent=1 // pred_check_branch
      %195 = sbr.rel (0) target = $region33
    $region32: #{dense_relu_pallas.1} parent=1 // pred_region
      _
    $region33: #{dense_relu_pallas.1} parent=1 // pred_fallthru
      _
    // Predicated region
    $region34: #{dense_relu_pallas.1} parent=1 // pred_check
      _
    $region35: #{dense_relu_pallas.1} parent=1 // pred_check_branch
      %197 = sbr.rel (0) target = $region37
    $region36: #{dense_relu_pallas.1} parent=1 // pred_region
      _
    $region37: #{dense_relu_pallas.1} parent=1 // pred_fallthru
      _
    // Predicated region
    $region38: #{dense_relu_pallas.1} parent=1 // pred_check
      _
    $region39: #{dense_relu_pallas.1} parent=1 // pred_check_branch
      %199 = sbr.rel (0) target = $region41
    $region40: #{dense_relu_pallas.1} parent=1 // pred_region
      _
    $region41: #{dense_relu_pallas.1} parent=1 // pred_fallthru
      _
    %200 = vsyncpa [#allocation4], 1

</llo_original>
